<compile_context>
chip_gen: v5e
topology: v5e:2x2
jax: 0.10.0
libtpu: 0.0.40
codegen_flags: <defaults>
</compile_context>

<pallas_src>
import jax
import jax.numpy as jnp
from jax import lax
from jax.experimental import pallas as pl
from jax.experimental.pallas import tpu as pltpu


def server_model_kernel(x_ref, w_ref, b_ref, o_ref):
    # x_ref: (TB, D) VMEM, w_ref: (1, D) VMEM (native nn.Linear layout),
    # b_ref: (1, 1) SMEM scalar, o_ref: (1, TB) VMEM (lane-dense logits slab).
    # MXU: contract D of w with D of x -> (1, TB).
    logits = lax.dot_general(
        w_ref[...],
        x_ref[...],
        dimension_numbers=(((1,), (1,)), ((), ())),
        preferred_element_type=jnp.float32,
    ) + b_ref[0, 0]
    # sigmoid(z) = 0.5 * (1 + tanh(0.5*z)): single exact EUP op, no inf intermediates.
    o_ref[...] = (0.5 * (1.0 + jnp.tanh(0.5 * logits))).astype(o_ref.dtype)


def _choose_batch_tile(B, D, *, itemsize=4, target_tile_bytes=2 << 20):
    """Rows per batch tile: byte-budgeted, (8,128)-friendly, >=2 grid steps if possible."""
    if B <= 256:
        return B  # single block; block dims equal the full array dims
    tb = (target_tile_bytes // (itemsize * D)) // 128 * 128
    tb = max(128, min(tb, 4096))
    # Keep at least 2 grid steps so v7x can shard tiles across both TensorCores.
    half_cap = max(128, (B // 2) // 128 * 128)
    return min(tb, half_cap)


def _vmem_limit_bytes():
    try:
        cap = pltpu.get_tpu_info().vmem_capacity_bytes
    except Exception:
        cap = 64 * 1024 * 1024  # conservative (v7x-sized) fallback
    return min(96 * 1024 * 1024, (cap * 3) // 4)


def server_model_forward(x, w, b):
    """x: [B, D], w: [1, D] (native nn.Linear weight), b: [1, 1]. Returns [B, 1] f32."""
    B, D = x.shape
    tb = _choose_batch_tile(B, D, itemsize=x.dtype.itemsize)
    grid = (pl.cdiv(B, tb),)

    out = pl.pallas_call(
        server_model_kernel,
        out_shape=jax.ShapeDtypeStruct((1, B), jnp.float32),
        grid=grid,
        in_specs=[
            pl.BlockSpec((tb, D), lambda i: (i, 0)),             # batch-tiled activations
            pl.BlockSpec((1, D), lambda i: (0, 0)),              # weight, VMEM-resident
            pl.BlockSpec(memory_space=pltpu.MemorySpace.SMEM),   # scalar bias in SMEM
        ],
        out_specs=pl.BlockSpec((1, tb), lambda i: (0, i)),       # lane-dense output slab
        compiler_params=pltpu.CompilerParams(
            dimension_semantics=("parallel",),   # shard batch tiles across TCs on v7x
            vmem_limit_bytes=_vmem_limit_bytes(),
        ),
    )(x, w, b)
    # (1, B) row-major is the same B contiguous values as (B, 1): cheap reshape back.
    return out.reshape(B, 1)


def init_params(key, input_size):
    # Mirror nn.Linear default init: U(-1/sqrt(fan_in), 1/sqrt(fan_in)).
    kw, kb = jax.random.split(key)
    bound = 1.0 / jnp.sqrt(jnp.float32(input_size))
    w = jax.random.uniform(kw, (1, input_size), jnp.float32, -bound, bound)  # native layout
    b = jax.random.uniform(kb, (1, 1), jnp.float32, -bound, bound)
    return w, b


if __name__ == "__main__":
    key = jax.random.PRNGKey(0)
    k_x, k_p = jax.random.split(key)

    batch, input_size = 8, 32
    x = jax.random.normal(k_x, (batch, input_size), jnp.float32)
    w, b = init_params(k_p, input_size)

    out = jax.block_until_ready(server_model_forward(x, w, b))
    ref = jax.nn.sigmoid(x @ w.T + b[0, 0])
    assert out.shape == (batch, 1)
    # tanh formulation is exact -> tight tolerance (no approx-reciprocal slack needed).
    assert jnp.allclose(out, ref, atol=1e-5, rtol=1e-5)

    # Multi-tile path: grid > 1 with a partial (masked) last block, no wrapper padding.
    batch2 = 600
    x2 = jax.random.normal(jax.random.PRNGKey(1), (batch2, input_size), jnp.float32)
    out2 = jax.block_until_ready(server_model_forward(x2, w, b))
    ref2 = jax.nn.sigmoid(x2 @ w.T + b[0, 0])
    assert out2.shape == (batch2, 1)
    assert jnp.allclose(out2, ref2, atol=1e-5, rtol=1e-5)

    print("KERNEL_OK")
</pallas_src>

<mosaic_0001>
module attributes {stable_mosaic.version = 11 : i64} {
  func.func @server_model_kernel(%arg0: i32, %arg1: memref<8x32xf32, #tpu.memory_space<vmem>>, %arg2: memref<1x32xf32, #tpu.memory_space<vmem>>, %arg3: memref<1x1xf32, #tpu.memory_space<smem>>, %arg4: memref<1x8xf32, #tpu.memory_space<vmem>>) attributes {dimension_semantics = [#tpu.dimension_semantics<parallel>], iteration_bounds = array<i64: 1>, scalar_prefetch = 0 : i64, scratch_operands = 0 : i64, tpu.core_type = #tpu.core_type<tc>, window_params = [{transform_indices = @transform_0, window_bounds = array<i64: 8, 32>}, {pipeline_mode = #tpu.pipeline_mode<synchronous>, transform_indices = @transform_1, window_bounds = array<i64: 1, 32>}, {transform_indices = @transform_2, window_bounds = array<i64: 1, 1>}, {transform_indices = @transform_3, window_bounds = array<i64: 1, 8>}]} {
    %c0 = arith.constant 0 : index
    %c0_0 = arith.constant 0 : index
    %0 = vector.load %arg2[%c0, %c0_0] : memref<1x32xf32, #tpu.memory_space<vmem>>, vector<1x32xf32>
    %c0_1 = arith.constant 0 : index
    %c0_2 = arith.constant 0 : index
    %1 = vector.load %arg1[%c0_1, %c0_2] : memref<8x32xf32, #tpu.memory_space<vmem>>, vector<8x32xf32>
    %cst = arith.constant dense<0.000000e+00> : vector<1x8xf32>
    %2 = tpu.matmul %0, %1, %cst {dimension_numbers = #tpu.dot_dimension_numbers<[1], [1], [0], [0], [0, 0, 1, 0], [], []>} : vector<1x32xf32>, vector<8x32xf32>, vector<1x8xf32> -> vector<1x8xf32>
    %c0_3 = arith.constant 0 : index
    %c0_4 = arith.constant 0 : index
    %3 = memref.load %arg3[%c0_3, %c0_4] : memref<1x1xf32, #tpu.memory_space<smem>>
    %4 = vector.broadcast %3 : f32 to vector<1x8xf32>
    %5 = arith.addf %2, %4 : vector<1x8xf32>
    %cst_5 = arith.constant 5.000000e-01 : f32
    %6 = vector.broadcast %cst_5 : f32 to vector<1x8xf32>
    %7 = arith.mulf %6, %5 : vector<1x8xf32>
    %8 = math.tanh %7 : vector<1x8xf32>
    %cst_6 = arith.constant 1.000000e+00 : f32
    %9 = vector.broadcast %cst_6 : f32 to vector<1x8xf32>
    %10 = arith.addf %9, %8 : vector<1x8xf32>
    %cst_7 = arith.constant 5.000000e-01 : f32
    %11 = vector.broadcast %cst_7 : f32 to vector<1x8xf32>
    %12 = arith.mulf %11, %10 : vector<1x8xf32>
    %c0_8 = arith.constant 0 : index
    %c0_9 = arith.constant 0 : index
    %13 = vector.load %arg4[%c0_8, %c0_9] : memref<1x8xf32, #tpu.memory_space<vmem>>, vector<1x8xf32>
    tpu.vector_store %arg4[%c0_8, %c0_9], %12 {strides = array<i32>} : memref<1x8xf32, #tpu.memory_space<vmem>>, vector<1x8xf32>,
    return
  }
  func.func @transform_0(%arg0: i32) -> (i32, i32) {
    %c0_i32 = arith.constant 0 : i32
    %c0_i32_0 = arith.constant 0 : i32
    return %arg0, %c0_i32 : i32, i32
  }
  func.func @transform_1(%arg0: i32) -> (i32, i32) {
    %c0_i32 = arith.constant 0 : i32
    %c0_i32_0 = arith.constant 0 : i32
    %c0_i32_1 = arith.constant 0 : i32
    return %c0_i32, %c0_i32_0 : i32, i32
  }
  func.func @transform_2(%arg0: i32) -> (i32, i32) {
    %c0_i32 = arith.constant 0 : i32
    %c0_i32_0 = arith.constant 0 : i32
    %c0_i32_1 = arith.constant 0 : i32
    return %c0_i32, %c0_i32_0 : i32, i32
  }
  func.func @transform_3(%arg0: i32) -> (i32, i32) {
    %c0_i32 = arith.constant 0 : i32
    %c0_i32_0 = arith.constant 0 : i32
    return %c0_i32, %arg0 : i32, i32
  }
}

</mosaic_0001>

<llo_original>
// kernel: tpu_custom_call.1
$region0: #{tpu_custom_call.1}
  #allocation0 [shape = 'u32[]', space=smem, size = 0x4, offset = 0x4, fixed_abs, tag = 'smem constant byte address 0x4 - core index']
  #allocation1 [shape = 'u32[72,128]{1,0:T(1,128)}', space=vmem, size = 0x9000, scoped, tag = 'internal scratch']
  #allocation2 [shape = 'f32[1,1]{1,0:T(1,128)S(6)}', space=smem, size = 0x200, scoped, tag = 'scoped memory for tpu_custom_call.1']
  %s0 = inlined_call_operand.hbm [shape: f32[8,32], index: 0, kind: input, shape index: {}]
  %s1 = inlined_call_operand.vmem [shape: f32[1,32], index: 1, kind: input, shape index: {}]
  %s2 = inlined_call_operand.<no memory space> [shape: f32[1,1], index: 2, kind: input, shape index: {}]
  %s3 = inlined_call_operand.hbm [shape: f32[1,8], index: 3, kind: output, shape index: {}]
  %s4 = sld [smem:[#allocation0]]
  $region26: #{tpu_custom_call.1} parent=0
    _
  %s6 = ssub.s32 1, %s4
  %s7 = scalar_select 0, %s6, %s4
  %8 = sst [smem:[#allocation2]] %s2
  $region1: #{tpu_custom_call.1} parent=0
    #allocation3 [shape = 'u8[4096]{0}', space=vmem, size = 0x1000, scoped, tag = 'input window, operand 0, single buffered']
    #allocation4 [shape = 's32[1]{0}', space=sflag, size = 0x4, scoped, tag = 'scoped memory for tpu_custom_call.1']
    #allocation5 [shape = 's32[1]{0}', space=sflag, size = 0x4, scoped, tag = 'scoped memory for tpu_custom_call.1']
    #allocation6 [shape = 'u8[512]{0}', space=vmem, size = 0x400, scoped, tag = 'output window, operand 0, single buffered']
    %9 = vsyncpa [#allocation4], 0
    %10 = vsyncpa [#allocation5], 0
    // Predicated region
    $region2: #{tpu_custom_call.1} parent=1 // pred_check
      _
    $region3: #{tpu_custom_call.1} parent=1 // pred_check_branch
      %12 = sbr.rel (0) target = $region5
    $region4: #{tpu_custom_call.1} parent=1 // pred_region
      %14 = vsyncadd [#allocation4], 0
      %s16 = sshll.u32 %s0, 4
      %s17 = int_to_ptr.hbm [resolvable:$true] %s16
      %s18 = sshll.u32 [#allocation3], 4
      %s19 = int_to_ptr.vmem [resolvable:$true] %s18
      %21 = dma.hbm_to_vmem [thread:$0]  %s17, 128, %s19, [#allocation4]
    $region5: #{tpu_custom_call.1} parent=1 // pred_fallthru
      _
    // Predicated region
    $region6: #{tpu_custom_call.1} parent=1 // pred_check
      _
    $region7: #{tpu_custom_call.1} parent=1 // pred_check_branch
      %23 = sbr.rel (0) target = $region9
    $region8: #{tpu_custom_call.1} parent=1 // pred_region
      _
    $region9: #{tpu_custom_call.1} parent=1 // pred_fallthru
      _
    // Predicated region
    $region10: #{tpu_custom_call.1} parent=1 // pred_check
      _
    $region11: #{tpu_custom_call.1} parent=1 // pred_check_branch
      %25 = sbr.rel (0) target = $region13
    $region12: #{tpu_custom_call.1} parent=1 // pred_region
      _
    $region13: #{tpu_custom_call.1} parent=1 // pred_fallthru
      _
    // Predicated region
    $region14: #{tpu_custom_call.1} parent=1 // pred_check
      _
    $region15: #{tpu_custom_call.1} parent=1 // pred_check_branch
      %27 = sbr.rel (0) target = $region17
    $region16: #{tpu_custom_call.1} parent=1 // pred_region
      %29 = dma.done [#allocation4], 128
    $region17: #{tpu_custom_call.1} parent=1 // pred_fallthru
      _
    %v30 = vld [vmem:[%s1] sm:$0x1]
    %v31 = vld [vmem:[#allocation3] sm:$0xff]
    %s32 = sld [smem:[#allocation2]]
    %v33 = vstv %s32
    %vm34 = vcmask 261120
    %v36 = vsel %vm34, %v30, 0
    %v39 = vsel %vm34, %v31, 0
    %41 = vmatpush.xpose.msra.mxu0 0.0
    %42 = vmatpush.xpose.msra.mxu0 0.0
    %43 = vmatpush.xpose.msra.mxu0 0.0
    %44 = vmatpush.xpose.msra.mxu0 0.0
    %45 = vmatpush.xpose.msra.mxu0 0.0
    %46 = vmatpush.xpose.msra.mxu0 0.0
    %47 = vmatpush.xpose.msra.mxu0 0.0
    %48 = vmatpush.xpose.msra.mxu0 0.0
    %49 = vmatpush.xpose.msra.mxu0 0.0
    %50 = vmatpush.xpose.msra.mxu0 0.0
    %51 = vmatpush.xpose.msra.mxu0 0.0
    %52 = vmatpush.xpose.msra.mxu0 0.0
    %53 = vmatpush.xpose.msra.mxu0 0.0
    %54 = vmatpush.xpose.msra.mxu0 0.0
    %55 = vmatpush.xpose.msra.mxu0 0.0
    %56 = vmatpush.xpose.msra.mxu0 %v39
    %57 = vmatmul.f32.gmra.mxu0 %v36
    %v58 = vpop.f32.mrf.mxu0
    %v59 = vadd.f32 %v33, %v58
    %60 = vdwg.mxu0
    %v61 = vmul.f32 %v59, 0.5
    %v62 = vtanh.pop %v61
    %v63 = vadd.f32 %v62, 1.0
    %v64 = vmul.f32 %v63, 0.5
    %vm65 = vcmask 57344
    %66 = vst.msk [vmem:[#allocation6] sm:$0x1] %vm65, %v64
    // Predicated region
    $region18: #{tpu_custom_call.1} parent=1 // pred_check
      _
    $region19: #{tpu_custom_call.1} parent=1 // pred_check_branch
      %68 = sbr.rel (0) target = $region21
    $region20: #{tpu_custom_call.1} parent=1 // pred_region
      %70 = vsyncadd [#allocation5], 0
      %s72 = sshll.u32 [#allocation6], 4
      %s73 = int_to_ptr.vmem [resolvable:$true] %s72
      %s74 = sshll.u32 %s3, 4
      %s75 = int_to_ptr.hbm [resolvable:$true] %s74
      %77 = dma.vmem_to_hbm [thread:$0]  %s73, 16, %s75, [#allocation5]
    $region21: #{tpu_custom_call.1} parent=1 // pred_fallthru
      _
    // Predicated region
    $region22: #{tpu_custom_call.1} parent=1 // pred_check
      _
    $region23: #{tpu_custom_call.1} parent=1 // pred_check_branch
      %79 = sbr.rel (0) target = $region25
    $region24: #{tpu_custom_call.1} parent=1 // pred_region
      %81 = dma.done [#allocation5], 16
    $region25: #{tpu_custom_call.1} parent=1 // pred_fallthru
      _
    %82 = vsyncpa [#allocation4], 1
    %83 = vsyncpa [#allocation5], 1

</llo_original>
